<compile_context>
chip_gen: v6e
topology: v6e:2x2x1
jax: 0.10.0
libtpu: 0.0.40
codegen_flags: <defaults>
</compile_context>

<pallas_src>
import functools

import jax
import jax.numpy as jnp
from jax.experimental import pallas as pl
from jax.experimental.pallas import tpu as pltpu


def _make_generator_kernel(bias_offsets, bias_sizes):
    """bias_offsets/sizes are static Python ints describing the packed bias buffer."""

    def kernel(x_ref, w1_ref, w2_ref, w3_ref, w4_ref, w5_ref, b_ref, o_ref):
        def bias(layer):
            off = bias_offsets[layer]
            n = bias_sizes[layer]
            return b_ref[off:off + n, :]              # (out, 1) -> broadcasts over lanes

        # Activations are (features, tile_b); batch on the lane axis (lane-dense).
        h = x_ref[...]                                # (input_dim, tile_b)

        h = jnp.dot(w1_ref[...], h, preferred_element_type=jnp.float32) + bias(0)
        h = jnp.maximum(h, 0.0)

        h = jnp.dot(w2_ref[...], h, preferred_element_type=jnp.float32) + bias(1)
        h = jnp.maximum(h, 0.0)

        h = jnp.dot(w3_ref[...], h, preferred_element_type=jnp.float32) + bias(2)
        h = jnp.maximum(h, 0.0)

        h = jnp.dot(w4_ref[...], h, preferred_element_type=jnp.float32) + bias(3)
        h = jnp.maximum(h, 0.0)

        y = jnp.dot(w5_ref[...], h, preferred_element_type=jnp.float32) + bias(4)

        # th.clamp(x, 0.0, 1.0)
        o_ref[...] = jnp.clip(y, 0.0, 1.0).astype(o_ref.dtype)

    return kernel


def generator_forward(x, params, *, tile_b=512):
    """x: (B, input_dim). params: list of (W, b), W in PyTorch (out, in) layout, b (out,)."""
    assert tile_b % 128 == 0, "tile_b must be a multiple of 128 for lane-dense layout"
    B, input_dim = x.shape
    hidden = params[0][0].shape[0]
    output_dim = params[-1][0].shape[0]

    # Pad batch to a tile multiple (at least one tile); padded lanes are sliced off at the end.
    n_tiles = max(1, pl.cdiv(B, tile_b))
    B_pad = n_tiles * tile_b

    # Batch-on-lanes layout for the kernel: (features, batch).
    xT = jnp.zeros((input_dim, B_pad), x.dtype).at[:, :B].set(x.T)

    # Pack the five biases into one (sum_out, 1) buffer.
    bias_sizes = tuple(int(b.shape[0]) for (_, b) in params)
    bias_offsets = []
    off = 0
    for n in bias_sizes:
        bias_offsets.append(off)
        off += n
    bias_offsets = tuple(bias_offsets)
    b_packed = jnp.concatenate([b.reshape(-1, 1) for (_, b) in params], axis=0)

    weights = [W for (W, _) in params]

    # BlockSpecs: x / out tiled along the batch (lane) axis; weights & packed bias
    # are grid-invariant (index_map -> (0, 0)) so they stay pinned in VMEM.
    x_spec = pl.BlockSpec((input_dim, tile_b), lambda i: (0, i))
    out_spec = pl.BlockSpec((output_dim, tile_b), lambda i: (0, i))
    w_specs = [pl.BlockSpec(W.shape, lambda i: (0, 0)) for W in weights]
    b_spec = pl.BlockSpec(b_packed.shape, lambda i: (0, 0))

    # Advisory cost estimate for the XLA scheduler.
    flops = 2 * B_pad * (input_dim * hidden + 3 * hidden * hidden + hidden * output_dim)
    bytes_accessed = (
        xT.size * xT.dtype.itemsize
        + B_pad * output_dim * 4
        + sum(W.size * W.dtype.itemsize for W in weights)
        + b_packed.size * b_packed.dtype.itemsize
    )
    cost = pl.CostEstimate(flops=flops, transcendentals=0, bytes_accessed=bytes_accessed)

    # Explicit VMEM budget (matters if tile_b is scaled aggressively, esp. v7x's 64 MiB).
    est_vmem = 4 * tile_b * (2 * input_dim + 2 * output_dim + 8 * hidden)
    est_vmem += 2 * 4 * (sum(W.size for W in weights) + b_packed.size)
    vmem_limit = int(min(max(2 * est_vmem, 16 * 1024 * 1024), 48 * 1024 * 1024))

    kernel = _make_generator_kernel(bias_offsets, bias_sizes)

    outT = pl.pallas_call(
        kernel,
        out_shape=jax.ShapeDtypeStruct((output_dim, B_pad), jnp.float32),
        grid_spec=pl.GridSpec(
            grid=(n_tiles,),
            in_specs=[x_spec] + w_specs + [b_spec],
            out_specs=out_spec,
        ),
        compiler_params=pltpu.CompilerParams(
            dimension_semantics=("parallel",),
            vmem_limit_bytes=vmem_limit,
        ),
        cost_estimate=cost,
    )(xT, *weights, b_packed)

    return outT.T[:B, :]


def init_generator_params(key, input_dim, output_dim):
    """PyTorch nn.Linear default init: uniform +/- 1/sqrt(fan_in); W in (out, in) layout."""
    hidden = input_dim // 2
    dims = [(input_dim, hidden),
            (hidden, hidden),
            (hidden, hidden),
            (hidden, hidden),
            (hidden, output_dim)]
    params = []
    for (fan_in, fan_out) in dims:
        key, kw, kb = jax.random.split(key, 3)
        bound = 1.0 / jnp.sqrt(jnp.float32(fan_in))
        W = jax.random.uniform(kw, (fan_out, fan_in), jnp.float32, -bound, bound)
        b = jax.random.uniform(kb, (fan_out,), jnp.float32, -bound, bound)
        params.append((W, b))
    return params


def generator_reference(x, params):
    h = x
    for (W, b) in params[:-1]:
        h = jnp.maximum(h @ W.T + b, 0.0)
    W, b = params[-1]
    y = h @ W.T + b
    return jnp.clip(y, 0.0, 1.0)


if __name__ == "__main__":
    key = jax.random.PRNGKey(0)
    B, input_dim, output_dim = 8, 32, 8

    k_x, k_p = jax.random.split(key)
    x = jax.random.normal(k_x, (B, input_dim), jnp.float32)
    params = init_generator_params(k_p, input_dim, output_dim)

    # Small test batch -> one 128-wide lane-dense tile; large batches use tile_b=512+.
    out = generator_forward(x, params, tile_b=128)
    out = jax.block_until_ready(out)

    ref = generator_reference(x, params)
    assert out.shape == (B, output_dim)
    assert jnp.max(jnp.abs(out - ref)) < 1e-5

    print("KERNEL_OK")
</pallas_src>

<mosaic_0001>
module attributes {stable_mosaic.version = 11 : i64} {
  func.func @kernel(%arg0: i32, %arg1: memref<32x128xf32, #tpu.memory_space<vmem>>, %arg2: memref<16x32xf32, #tpu.memory_space<vmem>>, %arg3: memref<16x16xf32, #tpu.memory_space<vmem>>, %arg4: memref<16x16xf32, #tpu.memory_space<vmem>>, %arg5: memref<16x16xf32, #tpu.memory_space<vmem>>, %arg6: memref<8x16xf32, #tpu.memory_space<vmem>>, %arg7: memref<72x1xf32, #tpu.memory_space<vmem>>, %arg8: memref<8x128xf32, #tpu.memory_space<vmem>>) attributes {dimension_semantics = [#tpu.dimension_semantics<parallel>], iteration_bounds = array<i64: 1>, scalar_prefetch = 0 : i64, scratch_operands = 0 : i64, tpu.core_type = #tpu.core_type<tc>, window_params = [{transform_indices = @transform_0, window_bounds = array<i64: 32, 128>}, {pipeline_mode = #tpu.pipeline_mode<synchronous>, transform_indices = @transform_1, window_bounds = array<i64: 16, 32>}, {pipeline_mode = #tpu.pipeline_mode<synchronous>, transform_indices = @transform_2, window_bounds = array<i64: 16, 16>}, {pipeline_mode = #tpu.pipeline_mode<synchronous>, transform_indices = @transform_3, window_bounds = array<i64: 16, 16>}, {pipeline_mode = #tpu.pipeline_mode<synchronous>, transform_indices = @transform_4, window_bounds = array<i64: 16, 16>}, {pipeline_mode = #tpu.pipeline_mode<synchronous>, transform_indices = @transform_5, window_bounds = array<i64: 8, 16>}, {pipeline_mode = #tpu.pipeline_mode<synchronous>, transform_indices = @transform_6, window_bounds = array<i64: 72, 1>}, {transform_indices = @transform_7, window_bounds = array<i64: 8, 128>}]} {
    %c0 = arith.constant 0 : index
    %c0_0 = arith.constant 0 : index
    %0 = vector.load %arg1[%c0, %c0_0] : memref<32x128xf32, #tpu.memory_space<vmem>>, vector<32x128xf32>
    %c0_1 = arith.constant 0 : index
    %c0_2 = arith.constant 0 : index
    %1 = vector.load %arg2[%c0_1, %c0_2] : memref<16x32xf32, #tpu.memory_space<vmem>>, vector<16x32xf32>
    %cst = arith.constant dense<0.000000e+00> : vector<16x128xf32>
    %2 = tpu.matmul %1, %0, %cst {dimension_numbers = #tpu.dot_dimension_numbers<[1], [0], [0], [1], [0, 0, 1, 1], [], []>} : vector<16x32xf32>, vector<32x128xf32>, vector<16x128xf32> -> vector<16x128xf32>
    %c0_3 = arith.constant 0 : index
    %c0_4 = arith.constant 0 : index
    %3 = vector.load %arg7[%c0_3, %c0_4] : memref<72x1xf32, #tpu.memory_space<vmem>>, vector<16x1xf32>
    %4 = vector.broadcast %3 : vector<16x1xf32> to vector<16x128xf32>
    %5 = arith.addf %2, %4 : vector<16x128xf32>
    %cst_5 = arith.constant 0.000000e+00 : f32
    %6 = vector.broadcast %cst_5 : f32 to vector<16x128xf32>
    %7 = arith.maximumf %5, %6 : vector<16x128xf32>
    %c0_6 = arith.constant 0 : index
    %c0_7 = arith.constant 0 : index
    %8 = vector.load %arg3[%c0_6, %c0_7] : memref<16x16xf32, #tpu.memory_space<vmem>>, vector<16x16xf32>
    %cst_8 = arith.constant dense<0.000000e+00> : vector<16x128xf32>
    %9 = tpu.matmul %8, %7, %cst_8 {dimension_numbers = #tpu.dot_dimension_numbers<[1], [0], [0], [1], [0, 0, 1, 1], [], []>} : vector<16x16xf32>, vector<16x128xf32>, vector<16x128xf32> -> vector<16x128xf32>
    %c16 = arith.constant 16 : index
    %c0_9 = arith.constant 0 : index
    %10 = vector.load %arg7[%c16, %c0_9] : memref<72x1xf32, #tpu.memory_space<vmem>>, vector<16x1xf32>
    %11 = vector.broadcast %10 : vector<16x1xf32> to vector<16x128xf32>
    %12 = arith.addf %9, %11 : vector<16x128xf32>
    %cst_10 = arith.constant 0.000000e+00 : f32
    %13 = vector.broadcast %cst_10 : f32 to vector<16x128xf32>
    %14 = arith.maximumf %12, %13 : vector<16x128xf32>
    %c0_11 = arith.constant 0 : index
    %c0_12 = arith.constant 0 : index
    %15 = vector.load %arg4[%c0_11, %c0_12] : memref<16x16xf32, #tpu.memory_space<vmem>>, vector<16x16xf32>
    %cst_13 = arith.constant dense<0.000000e+00> : vector<16x128xf32>
    %16 = tpu.matmul %15, %14, %cst_13 {dimension_numbers = #tpu.dot_dimension_numbers<[1], [0], [0], [1], [0, 0, 1, 1], [], []>} : vector<16x16xf32>, vector<16x128xf32>, vector<16x128xf32> -> vector<16x128xf32>
    %c32 = arith.constant 32 : index
    %c0_14 = arith.constant 0 : index
    %17 = vector.load %arg7[%c32, %c0_14] : memref<72x1xf32, #tpu.memory_space<vmem>>, vector<16x1xf32>
    %18 = vector.broadcast %17 : vector<16x1xf32> to vector<16x128xf32>
    %19 = arith.addf %16, %18 : vector<16x128xf32>
    %cst_15 = arith.constant 0.000000e+00 : f32
    %20 = vector.broadcast %cst_15 : f32 to vector<16x128xf32>
    %21 = arith.maximumf %19, %20 : vector<16x128xf32>
    %c0_16 = arith.constant 0 : index
    %c0_17 = arith.constant 0 : index
    %22 = vector.load %arg5[%c0_16, %c0_17] : memref<16x16xf32, #tpu.memory_space<vmem>>, vector<16x16xf32>
    %cst_18 = arith.constant dense<0.000000e+00> : vector<16x128xf32>
    %23 = tpu.matmul %22, %21, %cst_18 {dimension_numbers = #tpu.dot_dimension_numbers<[1], [0], [0], [1], [0, 0, 1, 1], [], []>} : vector<16x16xf32>, vector<16x128xf32>, vector<16x128xf32> -> vector<16x128xf32>
    %c48 = arith.constant 48 : index
    %c0_19 = arith.constant 0 : index
    %24 = vector.load %arg7[%c48, %c0_19] : memref<72x1xf32, #tpu.memory_space<vmem>>, vector<16x1xf32>
    %25 = vector.broadcast %24 : vector<16x1xf32> to vector<16x128xf32>
    %26 = arith.addf %23, %25 : vector<16x128xf32>
    %cst_20 = arith.constant 0.000000e+00 : f32
    %27 = vector.broadcast %cst_20 : f32 to vector<16x128xf32>
    %28 = arith.maximumf %26, %27 : vector<16x128xf32>
    %c0_21 = arith.constant 0 : index
    %c0_22 = arith.constant 0 : index
    %29 = vector.load %arg6[%c0_21, %c0_22] : memref<8x16xf32, #tpu.memory_space<vmem>>, vector<8x16xf32>
    %cst_23 = arith.constant dense<0.000000e+00> : vector<8x128xf32>
    %30 = tpu.matmul %29, %28, %cst_23 {dimension_numbers = #tpu.dot_dimension_numbers<[1], [0], [0], [1], [0, 0, 1, 1], [], []>} : vector<8x16xf32>, vector<16x128xf32>, vector<8x128xf32> -> vector<8x128xf32>
    %c64 = arith.constant 64 : index
    %c0_24 = arith.constant 0 : index
    %31 = vector.load %arg7[%c64, %c0_24] : memref<72x1xf32, #tpu.memory_space<vmem>>, vector<8x1xf32>
    %32 = vector.broadcast %31 : vector<8x1xf32> to vector<8x128xf32>
    %33 = arith.addf %30, %32 : vector<8x128xf32>
    %cst_25 = arith.constant 0.000000e+00 : f32
    %cst_26 = arith.constant 1.000000e+00 : f32
    %34 = vector.broadcast %cst_25 : f32 to vector<8x128xf32>
    %35 = arith.maximumf %34, %33 : vector<8x128xf32>
    %36 = vector.broadcast %cst_26 : f32 to vector<8x128xf32>
    %37 = arith.minimumf %36, %35 : vector<8x128xf32>
    %c0_27 = arith.constant 0 : index
    %c0_28 = arith.constant 0 : index
    %38 = vector.load %arg8[%c0_27, %c0_28] : memref<8x128xf32, #tpu.memory_space<vmem>>, vector<8x128xf32>
    tpu.vector_store %arg8[%c0_27, %c0_28], %37 {strides = array<i32>} : memref<8x128xf32, #tpu.memory_space<vmem>>, vector<8x128xf32>,
    return
  }
  func.func @transform_0(%arg0: i32) -> (i32, i32) {
    %c0_i32 = arith.constant 0 : i32
    %c0_i32_0 = arith.constant 0 : i32
    return %c0_i32, %arg0 : i32, i32
  }
  func.func @transform_1(%arg0: i32) -> (i32, i32) {
    %c0_i32 = arith.constant 0 : i32
    %c0_i32_0 = arith.constant 0 : i32
    %c0_i32_1 = arith.constant 0 : i32
    return %c0_i32, %c0_i32_0 : i32, i32
  }
  func.func @transform_2(%arg0: i32) -> (i32, i32) {
    %c0_i32 = arith.constant 0 : i32
    %c0_i32_0 = arith.constant 0 : i32
    %c0_i32_1 = arith.constant 0 : i32
    return %c0_i32, %c0_i32_0 : i32, i32
  }
  func.func @transform_3(%arg0: i32) -> (i32, i32) {
    %c0_i32 = arith.constant 0 : i32
    %c0_i32_0 = arith.constant 0 : i32
    %c0_i32_1 = arith.constant 0 : i32
    return %c0_i32, %c0_i32_0 : i32, i32
  }
  func.func @transform_4(%arg0: i32) -> (i32, i32) {
    %c0_i32 = arith.constant 0 : i32
    %c0_i32_0 = arith.constant 0 : i32
    %c0_i32_1 = arith.constant 0 : i32
    return %c0_i32, %c0_i32_0 : i32, i32
  }
  func.func @transform_5(%arg0: i32) -> (i32, i32) {
    %c0_i32 = arith.constant 0 : i32
    %c0_i32_0 = arith.constant 0 : i32
    %c0_i32_1 = arith.constant 0 : i32
    return %c0_i32, %c0_i32_0 : i32, i32
  }
  func.func @transform_6(%arg0: i32) -> (i32, i32) {
    %c0_i32 = arith.constant 0 : i32
    %c0_i32_0 = arith.constant 0 : i32
    %c0_i32_1 = arith.constant 0 : i32
    return %c0_i32, %c0_i32_0 : i32, i32
  }
  func.func @transform_7(%arg0: i32) -> (i32, i32) {
    %c0_i32 = arith.constant 0 : i32
    %c0_i32_0 = arith.constant 0 : i32
    return %c0_i32, %arg0 : i32, i32
  }
}

</mosaic_0001>

<llo_original>
// kernel: tpu_custom_call.1
$region0: #{tpu_custom_call.1}
  #allocation0 [shape = 'u32[]', space=smem, size = 0x4, offset = 0x4, fixed_abs, tag = 'smem constant byte address 0x4 - core index']
  #allocation1 [shape = 'u32[144,128]{1,0:T(1,128)}', space=vmem, size = 0x12000, scoped, tag = 'internal scratch']
  %s0 = inlined_call_operand.vmem [shape: f32[32,128], index: 0, kind: input, shape index: {}]
  %s1 = inlined_call_operand.vmem [shape: f32[16,32], index: 1, kind: input, shape index: {}]
  %s2 = inlined_call_operand.vmem [shape: f32[16,16], index: 2, kind: input, shape index: {}]
  %s3 = inlined_call_operand.hbm [shape: f32[16,16], index: 3, kind: input, shape index: {}]
  %s4 = inlined_call_operand.vmem [shape: f32[16,16], index: 4, kind: input, shape index: {}]
  %s5 = inlined_call_operand.hbm [shape: f32[8,16], index: 5, kind: input, shape index: {}]
  %s6 = inlined_call_operand.vmem [shape: f32[72,1], index: 6, kind: input, shape index: {}]
  %s7 = inlined_call_operand.hbm [shape: f32[8,128], index: 7, kind: output, shape index: {}]
  %s8 = sld [smem:[#allocation0]]
  $region46: #{tpu_custom_call.1} parent=0
    _
  %s10 = ssub.s32 1, %s8
  %s11 = scalar_select 0, %s10, %s8
  $region1: #{tpu_custom_call.1} parent=0
    #allocation2 [shape = 'u8[8192]{0}', space=vmem, size = 0x2000, scoped, tag = 'input window, operand 3, single buffered']
    #allocation3 [shape = 's32[1]{0}', space=sflag, size = 0x4, scoped, tag = 'scoped memory for tpu_custom_call.1']
    #allocation4 [shape = 's32[1]{0}', space=sflag, size = 0x4, scoped, tag = 'scoped memory for tpu_custom_call.1']
    #allocation5 [shape = 'u8[4096]{0}', space=vmem, size = 0x1000, scoped, tag = 'input window, operand 5, single buffered']
    #allocation6 [shape = 's32[1]{0}', space=sflag, size = 0x4, scoped, tag = 'scoped memory for tpu_custom_call.1']
    #allocation7 [shape = 'u8[4096]{0}', space=vmem, size = 0x1000, scoped, tag = 'output window, operand 0, single buffered']
    %12 = vsyncpa [#allocation3], 0
    %13 = vsyncpa [#allocation6], 0
    %14 = vsyncpa [#allocation4], 0
    // Predicated region
    $region2: #{tpu_custom_call.1} parent=1 // pred_check
      _
    $region3: #{tpu_custom_call.1} parent=1 // pred_check_branch
      %16 = sbr.rel (0) target = $region5
    $region4: #{tpu_custom_call.1} parent=1 // pred_region
      _
    $region5: #{tpu_custom_call.1} parent=1 // pred_fallthru
      _
    // Predicated region
    $region6: #{tpu_custom_call.1} parent=1 // pred_check
      _
    $region7: #{tpu_custom_call.1} parent=1 // pred_check_branch
      %18 = sbr.rel (0) target = $region9
    $region8: #{tpu_custom_call.1} parent=1 // pred_region
      _
    $region9: #{tpu_custom_call.1} parent=1 // pred_fallthru
      _
    // Predicated region
    $region10: #{tpu_custom_call.1} parent=1 // pred_check
      _
    $region11: #{tpu_custom_call.1} parent=1 // pred_check_branch
      %20 = sbr.rel (0) target = $region13
    $region12: #{tpu_custom_call.1} parent=1 // pred_region
      _
    $region13: #{tpu_custom_call.1} parent=1 // pred_fallthru
      _
    // Predicated region
    $region14: #{tpu_custom_call.1} parent=1 // pred_check
      _
    $region15: #{tpu_custom_call.1} parent=1 // pred_check_branch
      %22 = sbr.rel (0) target = $region17
    $region16: #{tpu_custom_call.1} parent=1 // pred_region
      %s24 = ssub.s32 256, 256
      %25 = vsyncadd [#allocation3], %s24
      %s26 = sshll.u32 [#allocation2], 4
      %s27 = int_to_ptr.vmem [resolvable:$true] %s26
      %32 = dma.hbm_to_vmem [thread:$0]  %s3, 256, %s27, [#allocation3], 128, 128, 8
    $region17: #{tpu_custom_call.1} parent=1 // pred_fallthru
      _
    // Predicated region
    $region18: #{tpu_custom_call.1} parent=1 // pred_check
      _
    $region19: #{tpu_custom_call.1} parent=1 // pred_check_branch
      %34 = sbr.rel (0) target = $region21
    $region20: #{tpu_custom_call.1} parent=1 // pred_region
      _
    $region21: #{tpu_custom_call.1} parent=1 // pred_fallthru
      _
    // Predicated region
    $region22: #{tpu_custom_call.1} parent=1 // pred_check
      _
    $region23: #{tpu_custom_call.1} parent=1 // pred_check_branch
      %36 = sbr.rel (0) target = $region25
    $region24: #{tpu_custom_call.1} parent=1 // pred_region
      %s38 = ssub.s32 128, 128
      %39 = vsyncadd [#allocation6], %s38
      %s41 = sshll.u32 [#allocation5], 4
      %s42 = int_to_ptr.vmem [resolvable:$true] %s41
      %44 = dma.hbm_to_vmem [thread:$0]  %s5, 128, %s42, [#allocation6]
    $region25: #{tpu_custom_call.1} parent=1 // pred_fallthru
      _
    // Predicated region
    $region26: #{tpu_custom_call.1} parent=1 // pred_check
      _
    $region27: #{tpu_custom_call.1} parent=1 // pred_check_branch
      %46 = sbr.rel (0) target = $region29
    $region28: #{tpu_custom_call.1} parent=1 // pred_region
      _
    $region29: #{tpu_custom_call.1} parent=1 // pred_fallthru
      _
    // Predicated region
    $region30: #{tpu_custom_call.1} parent=1 // pred_check
      _
    $region31: #{tpu_custom_call.1} parent=1 // pred_check_branch
      %48 = sbr.rel (0) target = $region33
    $region32: #{tpu_custom_call.1} parent=1 // pred_region
      %49 = dma.done [#allocation3], 256
    $region33: #{tpu_custom_call.1} parent=1 // pred_fallthru
      _
    // Predicated region
    $region34: #{tpu_custom_call.1} parent=1 // pred_check
      _
    $region35: #{tpu_custom_call.1} parent=1 // pred_check_branch
      %51 = sbr.rel (0) target = $region37
    $region36: #{tpu_custom_call.1} parent=1 // pred_region
      %52 = dma.done [#allocation6], 128
    $region37: #{tpu_custom_call.1} parent=1 // pred_fallthru
      _
    %v53 = vld [vmem:[%s0] sm:$0xff]
    %v54 = vld [vmem:[%s0 + $0x8] sm:$0xff]
    %v55 = vld [vmem:[%s0 + $0x10] sm:$0xff]
    %v56 = vld [vmem:[%s0 + $0x18] sm:$0xff]
    %v57 = vld [vmem:[%s1] sm:$0xff]
    %v58 = vld [vmem:[%s1 + $0x8] sm:$0xff]
    %v59 = vld [vmem:[%s6] sm:$0xff]
    %v60 = vld [vmem:[%s6 + $0x8] sm:$0xff]
    %62 = vset.pattern.permute.xlu0 0
    %63 = vperm.xlu0 %62, %v59
    %v64 = vpop.permute.xlu0 %63
    %67 = vset.pattern.permute.xlu0 0
    %68 = vperm.xlu0 %67, %v60
    %v69 = vpop.permute.xlu0 %68
    %vm71 = vcmask 261120
    %v73 = vsel %vm71, %v57, 0
    %v76 = vsel %vm71, %v58, 0
    %78 = vmatprep.subr.mxu0 0.0
    %79 = vmatpush1.msra.mxu0 0.0
    %80 = vmatprep.subr.mxu0 0.0
    %81 = vmatpush1.msra.mxu0 0.0
    %82 = vmatprep.subr.mxu0 0.0
    %83 = vmatpush1.msra.mxu0 0.0
    %84 = vmatprep.subr.mxu0 0.0
    %85 = vmatpush1.msra.mxu0 0.0
    %86 = vmatprep.subr.mxu0 0.0
    %87 = vmatpush1.msra.mxu0 0.0
    %88 = vmatprep.subr.mxu0 0.0
    %89 = vmatpush1.msra.mxu0 0.0
    %90 = vmatprep.subr.mxu0 0.0
    %91 = vmatpush1.msra.mxu0 0.0
    %92 = vmatprep.subr.mxu0 0.0
    %93 = vmatpush1.msra.mxu0 0.0
    %94 = vmatprep.subr.mxu0 0.0
    %95 = vmatpush1.msra.mxu0 0.0
    %96 = vmatprep.subr.mxu0 0.0
    %97 = vmatpush1.msra.mxu0 0.0
    %98 = vmatprep.subr.mxu0 0.0
    %99 = vmatpush1.msra.mxu0 0.0
    %100 = vmatprep.subr.mxu0 0.0
    %101 = vmatpush1.msra.mxu0 0.0
    %102 = vmatprep.subr.mxu0 0.0
    %103 = vmatpush1.msra.mxu0 %v56
    %104 = vmatprep.subr.mxu0 0.0
    %105 = vmatpush1.msra.mxu0 %v55
    %106 = vmatprep.subr.mxu0 0.0
    %107 = vmatpush1.msra.mxu0 %v54
    %108 = vmatprep.subr.mxu0 0.0
    %109 = vmatpush1.msra.mxu0 %v53
    %110 = vmatprep.subr.mxu0 0.0
    %111 = vmatpush2.msra.mxu0 0.0
    %112 = vmatprep.subr.mxu0 0.0
    %113 = vmatpush2.msra.mxu0 0.0
    %114 = vmatprep.subr.mxu0 0.0
    %115 = vmatpush2.msra.mxu0 0.0
    %116 = vmatprep.subr.mxu0 0.0
    %117 = vmatpush2.msra.mxu0 0.0
    %118 = vmatprep.subr.mxu0 0.0
    %119 = vmatpush2.msra.mxu0 0.0
    %120 = vmatprep.subr.mxu0 0.0
    %121 = vmatpush2.msra.mxu0 0.0
    %122 = vmatprep.subr.mxu0 0.0
    %123 = vmatpush2.msra.mxu0 0.0
    %124 = vmatprep.subr.mxu0 0.0
    %125 = vmatpush2.msra.mxu0 0.0
    %126 = vmatprep.subr.mxu0 0.0
    %127 = vmatpush2.msra.mxu0 0.0
    %128 = vmatprep.subr.mxu0 0.0
    %129 = vmatpush2.msra.mxu0 0.0
    %130 = vmatprep.subr.mxu0 0.0
    %131 = vmatpush2.msra.mxu0 0.0
    %132 = vmatprep.subr.mxu0 0.0
    %133 = vmatpush2.msra.mxu0 0.0
    %134 = vmatprep.subr.mxu0 0.0
    %135 = vmatpush2.msra.mxu0 0.0
    %136 = vmatprep.subr.mxu0 0.0
    %137 = vmatpush2.msra.mxu0 0.0
    %138 = vmatprep.subr.mxu0 0.0
    %139 = vmatpush2.msra.mxu0 0.0
    %140 = vmatprep.subr.mxu0 0.0
    %141 = vmatpush2.msra.mxu0 0.0
    %142 = vmatprep.mubr.f32.mxu0 0.0
    %143 = vmatmul.mubr.f32.gmra.mxu0 %v73
    %v144 = vpop.f32.mrf.mxu0
    %v145 = vadd.f32 %v64, %v144
    %v146 = vpop.f32.mrf.mxu0
    %147 = vmatprep.mubr.f32.mxu0 0.0
    %148 = vmatmul.mubr.f32.gmra.mxu0 %v76
    %v149 = vpop.f32.mrf.mxu0
    %v150 = vadd.f32 %v69, %v149
    %v151 = vpop.f32.mrf.mxu0
    %152 = vdwg.mxu0
    %v153 = vmax.f32 %v145, 0.0
    %v154 = vmax.f32 %v150, 0.0
    %v155 = vld [vmem:[%s2] sm:$0xff]
    %v156 = vld [vmem:[%s2 + $0x8] sm:$0xff]
    %v157 = vld [vmem:[%s6 + $0x10] sm:$0xff]
    %v158 = vld [vmem:[%s6 + $0x18] sm:$0xff]
    %160 = vset.pattern.permute.xlu0 0
    %161 = vperm.xlu0 %160, %v157
    %v162 = vpop.permute.xlu0 %161
    %165 = vset.pattern.permute.xlu0 0
    %166 = vperm.xlu0 %165, %v158
    %v167 = vpop.permute.xlu0 %166
    %vm169 = vcmask 130048
    %v171 = vsel %vm169, %v155, 0
    %v174 = vsel %vm169, %v156, 0
    %176 = vmatprep.subr.mxu0 0.0
    %177 = vmatpush1.msra.mxu0 0.0
    %178 = vmatprep.subr.mxu0 0.0
    %179 = vmatpush1.msra.mxu0 0.0
    %180 = vmatprep.subr.mxu0 0.0
    %181 = vmatpush1.msra.mxu0 0.0
    %182 = vmatprep.subr.mxu0 0.0
    %183 = vmatpush1.msra.mxu0 0.0
    %184 = vmatprep.subr.mxu0 0.0
    %185 = vmatpush1.msra.mxu0 0.0
    %186 = vmatprep.subr.mxu0 0.0
    %187 = vmatpush1.msra.mxu0 0.0
    %188 = vmatprep.subr.mxu0 0.0
    %189 = vmatpush1.msra.mxu0 0.0
    %190 = vmatprep.subr.mxu0 0.0
    %191 = vmatpush1.msra.mxu0 0.0
    %192 = vmatprep.subr.mxu0 0.0
    %193 = vmatpush1.msra.mxu0 0.0
    %194 = vmatprep.subr.mxu0 0.0
    %195 = vmatpush1.msra.mxu0 0.0
    %196 = vmatprep.subr.mxu0 0.0
    %197 = vmatpush1.msra.mxu0 0.0
    %198 = vmatprep.subr.mxu0 0.0
    %199 = vmatpush1.msra.mxu0 0.0
    %200 = vmatprep.subr.mxu0 0.0
    %201 = vmatpush1.msra.mxu0 0.0
    %202 = vmatprep.subr.mxu0 0.0
    %203 = vmatpush1.msra.mxu0 0.0
    %204 = vmatprep.subr.mxu0 0.0
    %205 = vmatpush1.msra.mxu0 %v154
    %206 = vmatprep.subr.mxu0 0.0
    %207 = vmatpush1.msra.mxu0 %v153
    %208 = vmatprep.subr.mxu0 0.0
    %209 = vmatpush2.msra.mxu0 0.0
    %210 = vmatprep.subr.mxu0 0.0
    %211 = vmatpush2.msra.mxu0 0.0
    %212 = vmatprep.subr.mxu0 0.0
    %213 = vmatpush2.msra.mxu0 0.0
    %214 = vmatprep.subr.mxu0 0.0
    %215 = vmatpush2.msra.mxu0 0.0
    %216 = vmatprep.subr.mxu0 0.0
    %217 = vmatpush2.msra.mxu0 0.0
    %218 = vmatprep.subr.mxu0 0.0
    %219 = vmatpush2.msra.mxu0 0.0
    %220 = vmatprep.subr.mxu0 0.0
    %221 = vmatpush2.msra.mxu0 0.0
    %222 = vmatprep.subr.mxu0 0.0
    %223 = vmatpush2.msra.mxu0 0.0
    %224 = vmatprep.subr.mxu0 0.0
    %225 = vmatpush2.msra.mxu0 0.0
    %226 = vmatprep.subr.mxu0 0.0
    %227 = vmatpush2.msra.mxu0 0.0
    %228 = vmatprep.subr.mxu0 0.0
    %229 = vmatpush2.msra.mxu0 0.0
    %230 = vmatprep.subr.mxu0 0.0
    %231 = vmatpush2.msra.mxu0 0.0
    %232 = vmatprep.subr.mxu0 0.0
    %233 = vmatpush2.msra.mxu0 0.0
    %234 = vmatprep.subr.mxu0 0.0
    %235 = vmatpush2.msra.mxu0 0.0
    %236 = vmatprep.subr.mxu0 0.0
    %237 = vmatpush2.msra.mxu0 0.0
    %238 = vmatprep.subr.mxu0 0.0
    %239 = vmatpush2.msra.mxu0 0.0
    %240 = vmatprep.mubr.f32.mxu0 0.0
    %241 = vmatmul.mubr.f32.gmra.mxu0 %v171
    %v242 = vpop.f32.mrf.mxu0
    %v243 = vadd.f32 %v162, %v242
    %v244 = vpop.f32.mrf.mxu0
    %245 = vmatprep.mubr.f32.mxu0 0.0
    %246 = vmatmul.mubr.f32.gmra.mxu0 %v174
    %v247 = vpop.f32.mrf.mxu0
    %v248 = vadd.f32 %v167, %v247
    %v249 = vpop.f32.mrf.mxu0
    %250 = vdwg.mxu0
    %v251 = vmax.f32 %v243, 0.0
    %v252 = vmax.f32 %v248, 0.0
    %v253 = vld [vmem:[#allocation2] sm:$0xff]
    %v254 = vld [vmem:[#allocation2 + $0x8] sm:$0xff]
    %v255 = vld [vmem:[%s6 + $0x20] sm:$0xff]
    %v256 = vld [vmem:[%s6 + $0x28] sm:$0xff]
    %258 = vset.pattern.permute.xlu0 0
    %259 = vperm.xlu0 %258, %v255
    %v260 = vpop.permute.xlu0 %259
    %263 = vset.pattern.permute.xlu0 0
    %264 = vperm.xlu0 %263, %v256
    %v265 = vpop.permute.xlu0 %264
    %v268 = vsel %vm169, %v253, 0
    %v271 = vsel %vm169, %v254, 0
    %273 = vmatprep.subr.mxu0 0.0
    %274 = vmatpush1.msra.mxu0 0.0
    %275 = vmatprep.subr.mxu0 0.0
    %276 = vmatpush1.msra.mxu0 0.0
    %277 = vmatprep.subr.mxu0 0.0
    %278 = vmatpush1.msra.mxu0 0.0
    %279 = vmatprep.subr.mxu0 0.0
    %280 = vmatpush1.msra.mxu0 0.0
    %281 = vmatprep.subr.mxu0 0.0
    %282 = vmatpush1.msra.mxu0 0.0
    %283 = vmatprep.subr.mxu0 0.0
    %284 = vmatpush1.msra.mxu0 0.0
    %285 = vmatprep.subr.mxu0 0.0
    %286 = vmatpush1.msra.mxu0 0.0
    %287 = vmatprep.subr.mxu0 0.0
    %288 = vmatpush1.msra.mxu0 0.0
    %289 = vmatprep.subr.mxu0 0.0
    %290 = vmatpush1.msra.mxu0 0.0
    %291 = vmatprep.subr.mxu0 0.0
    %292 = vmatpush1.msra.mxu0 0.0
    %293 = vmatprep.subr.mxu0 0.0
    %294 = vmatpush1.msra.mxu0 0.0
    %295 = vmatprep.subr.mxu0 0.0
    %296 = vmatpush1.msra.mxu0 0.0
    %297 = vmatprep.subr.mxu0 0.0
    %298 = vmatpush1.msra.mxu0 0.0
    %299 = vmatprep.subr.mxu0 0.0
    %300 = vmatpush1.msra.mxu0 0.0
    %301 = vmatprep.subr.mxu0 0.0
    %302 = vmatpush1.msra.mxu0 %v252
    %303 = vmatprep.subr.mxu0 0.0
    %304 = vmatpush1.msra.mxu0 %v251
    %305 = vmatprep.subr.mxu0 0.0
    %306 = vmatpush2.msra.mxu0 0.0
    %307 = vmatprep.subr.mxu0 0.0
    %308 = vmatpush2.msra.mxu0 0.0
    %309 = vmatprep.subr.mxu0 0.0
    %310 = vmatpush2.msra.mxu0 0.0
    %311 = vmatprep.subr.mxu0 0.0
    %312 = vmatpush2.msra.mxu0 0.0
    %313 = vmatprep.subr.mxu0 0.0
    %314 = vmatpush2.msra.mxu0 0.0
    %315 = vmatprep.subr.mxu0 0.0
    %316 = vmatpush2.msra.mxu0 0.0
    %317 = vmatprep.subr.mxu0 0.0
    %318 = vmatpush2.msra.mxu0 0.0
    %319 = vmatprep.subr.mxu0 0.0
    %320 = vmatpush2.msra.mxu0 0.0
    %321 = vmatprep.subr.mxu0 0.0
    %322 = vmatpush2.msra.mxu0 0.0
    %323 = vmatprep.subr.mxu0 0.0
    %324 = vmatpush2.msra.mxu0 0.0
    %325 = vmatprep.subr.mxu0 0.0
    %326 = vmatpush2.msra.mxu0 0.0
    %327 = vmatprep.subr.mxu0 0.0
    %328 = vmatpush2.msra.mxu0 0.0
    %329 = vmatprep.subr.mxu0 0.0
    %330 = vmatpush2.msra.mxu0 0.0
    %331 = vmatprep.subr.mxu0 0.0
    %332 = vmatpush2.msra.mxu0 0.0
    %333 = vmatprep.subr.mxu0 0.0
    %334 = vmatpush2.msra.mxu0 0.0
    %335 = vmatprep.subr.mxu0 0.0
    %336 = vmatpush2.msra.mxu0 0.0
    %337 = vmatprep.mubr.f32.mxu0 0.0
    %338 = vmatmul.mubr.f32.gmra.mxu0 %v268
    %v339 = vpop.f32.mrf.mxu0
    %v340 = vadd.f32 %v260, %v339
    %v341 = vpop.f32.mrf.mxu0
    %342 = vmatprep.mubr.f32.mxu0 0.0
    %343 = vmatmul.mubr.f32.gmra.mxu0 %v271
    %v344 = vpop.f32.mrf.mxu0
    %v345 = vadd.f32 %v265, %v344
    %v346 = vpop.f32.mrf.mxu0
    %347 = vdwg.mxu0
    %v348 = vmax.f32 %v340, 0.0
    %v349 = vmax.f32 %v345, 0.0
    %v350 = vld [vmem:[%s4] sm:$0xff]
    %v351 = vld [vmem:[%s4 + $0x8] sm:$0xff]
    %v352 = vld [vmem:[%s6 + $0x30] sm:$0xff]
    %v353 = vld [vmem:[%s6 + $0x38] sm:$0xff]
    %355 = vset.pattern.permute.xlu0 0
    %356 = vperm.xlu0 %355, %v352
    %v357 = vpop.permute.xlu0 %356
    %360 = vset.pattern.permute.xlu0 0
    %361 = vperm.xlu0 %360, %v353
    %v362 = vpop.permute.xlu0 %361
    %v365 = vsel %vm169, %v350, 0
    %v368 = vsel %vm169, %v351, 0
    %370 = vmatprep.subr.mxu0 0.0
    %371 = vmatpush1.msra.mxu0 0.0
    %372 = vmatprep.subr.mxu0 0.0
    %373 = vmatpush1.msra.mxu0 0.0
    %374 = vmatprep.subr.mxu0 0.0
    %375 = vmatpush1.msra.mxu0 0.0
    %376 = vmatprep.subr.mxu0 0.0
    %377 = vmatpush1.msra.mxu0 0.0
    %378 = vmatprep.subr.mxu0 0.0
    %379 = vmatpush1.msra.mxu0 0.0
    %380 = vmatprep.subr.mxu0 0.0
    %381 = vmatpush1.msra.mxu0 0.0
    %382 = vmatprep.subr.mxu0 0.0
    %383 = vmatpush1.msra.mxu0 0.0
    %384 = vmatprep.subr.mxu0 0.0
    %385 = vmatpush1.msra.mxu0 0.0
    %386 = vmatprep.subr.mxu0 0.0
    %387 = vmatpush1.msra.mxu0 0.0
    %388 = vmatprep.subr.mxu0 0.0
    %389 = vmatpush1.msra.mxu0 0.0
    %390 = vmatprep.subr.mxu0 0.0
    %391 = vmatpush1.msra.mxu0 0.0
    %392 = vmatprep.subr.mxu0 0.0
    %393 = vmatpush1.msra.mxu0 0.0
    %394 = vmatprep.subr.mxu0 0.0
    %395 = vmatpush1.msra.mxu0 0.0
    %396 = vmatprep.subr.mxu0 0.0
    %397 = vmatpush1.msra.mxu0 0.0
    %398 = vmatprep.subr.mxu0 0.0
    %399 = vmatpush1.msra.mxu0 %v349
    %400 = vmatprep.subr.mxu0 0.0
    %401 = vmatpush1.msra.mxu0 %v348
    %402 = vmatprep.subr.mxu0 0.0
    %403 = vmatpush2.msra.mxu0 0.0
    %404 = vmatprep.subr.mxu0 0.0
    %405 = vmatpush2.msra.mxu0 0.0
    %406 = vmatprep.subr.mxu0 0.0
    %407 = vmatpush2.msra.mxu0 0.0
    %408 = vmatprep.subr.mxu0 0.0
    %409 = vmatpush2.msra.mxu0 0.0
    %410 = vmatprep.subr.mxu0 0.0
    %411 = vmatpush2.msra.mxu0 0.0
    %412 = vmatprep.subr.mxu0 0.0
    %413 = vmatpush2.msra.mxu0 0.0
    %414 = vmatprep.subr.mxu0 0.0
    %415 = vmatpush2.msra.mxu0 0.0
    %416 = vmatprep.subr.mxu0 0.0
    %417 = vmatpush2.msra.mxu0 0.0
    %418 = vmatprep.subr.mxu0 0.0
    %419 = vmatpush2.msra.mxu0 0.0
    %420 = vmatprep.subr.mxu0 0.0
    %421 = vmatpush2.msra.mxu0 0.0
    %422 = vmatprep.subr.mxu0 0.0
    %423 = vmatpush2.msra.mxu0 0.0
    %424 = vmatprep.subr.mxu0 0.0
    %425 = vmatpush2.msra.mxu0 0.0
    %426 = vmatprep.subr.mxu0 0.0
    %427 = vmatpush2.msra.mxu0 0.0
    %428 = vmatprep.subr.mxu0 0.0
    %429 = vmatpush2.msra.mxu0 0.0
    %430 = vmatprep.subr.mxu0 0.0
    %431 = vmatpush2.msra.mxu0 0.0
    %432 = vmatprep.subr.mxu0 0.0
    %433 = vmatpush2.msra.mxu0 0.0
    %434 = vmatprep.mubr.f32.mxu0 0.0
    %435 = vmatmul.mubr.f32.gmra.mxu0 %v365
    %v436 = vpop.f32.mrf.mxu0
    %v437 = vadd.f32 %v357, %v436
    %v438 = vpop.f32.mrf.mxu0
    %439 = vmatprep.mubr.f32.mxu0 0.0
    %440 = vmatmul.mubr.f32.gmra.mxu0 %v368
    %v441 = vpop.f32.mrf.mxu0
    %v442 = vadd.f32 %v362, %v441
    %v443 = vpop.f32.mrf.mxu0
    %444 = vdwg.mxu0
    %v445 = vmax.f32 %v437, 0.0
    %v446 = vmax.f32 %v442, 0.0
    %v447 = vld [vmem:[#allocation5] sm:$0xff]
    %v448 = vld [vmem:[%s6 + $0x40] sm:$0xff]
    %450 = vset.pattern.permute.xlu0 0
    %451 = vperm.xlu0 %450, %v448
    %v452 = vpop.permute.xlu0 %451
    %v455 = vsel %vm169, %v447, 0
    %457 = vmatprep.subr.mxu0 0.0
    %458 = vmatpush1.msra.mxu0 0.0
    %459 = vmatprep.subr.mxu0 0.0
    %460 = vmatpush1.msra.mxu0 0.0
    %461 = vmatprep.subr.mxu0 0.0
    %462 = vmatpush1.msra.mxu0 0.0
    %463 = vmatprep.subr.mxu0 0.0
    %464 = vmatpush1.msra.mxu0 0.0
    %465 = vmatprep.subr.mxu0 0.0
    %466 = vmatpush1.msra.mxu0 0.0
    %467 = vmatprep.subr.mxu0 0.0
    %468 = vmatpush1.msra.mxu0 0.0
    %469 = vmatprep.subr.mxu0 0.0
    %470 = vmatpush1.msra.mxu0 0.0
    %471 = vmatprep.subr.mxu0 0.0
    %472 = vmatpush1.msra.mxu0 0.0
    %473 = vmatprep.subr.mxu0 0.0
    %474 = vmatpush1.msra.mxu0 0.0
    %475 = vmatprep.subr.mxu0 0.0
    %476 = vmatpush1.msra.mxu0 0.0
    %477 = vmatprep.subr.mxu0 0.0
    %478 = vmatpush1.msra.mxu0 0.0
    %479 = vmatprep.subr.mxu0 0.0
    %480 = vmatpush1.msra.mxu0 0.0
    %481 = vmatprep.subr.mxu0 0.0
    %482 = vmatpush1.msra.mxu0 0.0
    %483 = vmatprep.subr.mxu0 0.0
    %484 = vmatpush1.msra.mxu0 0.0
    %485 = vmatprep.subr.mxu0 0.0
    %486 = vmatpush1.msra.mxu0 %v446
    %487 = vmatprep.subr.mxu0 0.0
    %488 = vmatpush1.msra.mxu0 %v445
    %489 = vmatprep.subr.mxu0 0.0
    %490 = vmatpush2.msra.mxu0 0.0
    %491 = vmatprep.subr.mxu0 0.0
    %492 = vmatpush2.msra.mxu0 0.0
    %493 = vmatprep.subr.mxu0 0.0
    %494 = vmatpush2.msra.mxu0 0.0
    %495 = vmatprep.subr.mxu0 0.0
    %496 = vmatpush2.msra.mxu0 0.0
    %497 = vmatprep.subr.mxu0 0.0
    %498 = vmatpush2.msra.mxu0 0.0
    %499 = vmatprep.subr.mxu0 0.0
    %500 = vmatpush2.msra.mxu0 0.0
    %501 = vmatprep.subr.mxu0 0.0
    %502 = vmatpush2.msra.mxu0 0.0
    %503 = vmatprep.subr.mxu0 0.0
    %504 = vmatpush2.msra.mxu0 0.0
    %505 = vmatprep.subr.mxu0 0.0
    %506 = vmatpush2.msra.mxu0 0.0
    %507 = vmatprep.subr.mxu0 0.0
    %508 = vmatpush2.msra.mxu0 0.0
    %509 = vmatprep.subr.mxu0 0.0
    %510 = vmatpush2.msra.mxu0 0.0
    %511 = vmatprep.subr.mxu0 0.0
    %512 = vmatpush2.msra.mxu0 0.0
    %513 = vmatprep.subr.mxu0 0.0
    %514 = vmatpush2.msra.mxu0 0.0
    %515 = vmatprep.subr.mxu0 0.0
    %516 = vmatpush2.msra.mxu0 0.0
    %517 = vmatprep.subr.mxu0 0.0
    %518 = vmatpush2.msra.mxu0 0.0
    %519 = vmatprep.subr.mxu0 0.0
    %520 = vmatpush2.msra.mxu0 0.0
    %521 = vmatprep.mubr.f32.mxu0 0.0
    %522 = vmatmul.mubr.f32.gmra.mxu0 %v455
    %v523 = vpop.f32.mrf.mxu0
    %v524 = vadd.f32 %v452, %v523
    %v525 = vpop.f32.mrf.mxu0
    %526 = vdwg.mxu0
    %v527 = vmax.f32 %v524, 0.0
    %v528 = vmin.f32 %v527, 1.0
    %529 = vst [vmem:[#allocation7] sm:$0xff] %v528
    // Predicated region
    $region38: #{tpu_custom_call.1} parent=1 // pred_check
      _
    $region39: #{tpu_custom_call.1} parent=1 // pred_check_branch
      %531 = sbr.rel (0) target = $region41
    $region40: #{tpu_custom_call.1} parent=1 // pred_region
      %s533 = ssub.s32 128, 128
      %534 = vsyncadd [#allocation4], %s533
      %s536 = sshll.u32 [#allocation7], 4
      %s537 = int_to_ptr.vmem [resolvable:$true] %s536
      %539 = dma.vmem_to_hbm [thread:$0]  %s537, 128, %s7, [#allocation4]
    $region41: #{tpu_custom_call.1} parent=1 // pred_fallthru
      _
    // Predicated region
    $region42: #{tpu_custom_call.1} parent=1 // pred_check
      _
    $region43: #{tpu_custom_call.1} parent=1 // pred_check_branch
      %541 = sbr.rel (0) target = $region45
    $region44: #{tpu_custom_call.1} parent=1 // pred_region
      %542 = dma.done [#allocation4], 128
    $region45: #{tpu_custom_call.1} parent=1 // pred_fallthru
      _
    %543 = vsyncpa [#allocation3], 1
    %544 = vsyncpa [#allocation6], 1
    %545 = vsyncpa [#allocation4], 1

</llo_original>
